<compile_context>
chip_gen: v7x
topology: tpu7x:2x2x1
jax: 0.10.0
libtpu: 0.0.40
codegen_flags: <defaults>
</compile_context>

<pallas_src>
import functools

import jax
import jax.numpy as jnp
from jax import lax
from jax.experimental import pallas as pl
from jax.experimental.pallas import tpu as pltpu

_LANE = 128


def _round_up(n, m):
    return ((n + m - 1) // m) * m


def _lanes(n):
    return _round_up(max(int(n), 1), _LANE)


def _vmem_limit_bytes():
    # Generation-aware budget: v5e/v6e have 128 MiB VMEM, v7x only 64 MiB.
    try:
        cap = int(pltpu.get_tpu_info().vmem_capacity_bytes)
    except Exception:
        cap = 64 * 1024 * 1024
    return min((cap * 3) // 4, 96 * 1024 * 1024)


_VMEM_LIMIT = _vmem_limit_bytes()
_TILE_BUDGET = int(_VMEM_LIMIT * 0.6)   # headroom for pipeline bookkeeping/spills


def _pick_row_tile(n_rows, per_row_bytes, max_tile, vmem_budget):
    """Largest multiple-of-8 row tile <= max_tile that fits the VMEM budget."""
    cap_rows = max(int(vmem_budget) // max(int(per_row_bytes), 1), 8)
    tile = min(int(max_tile), _round_up(int(n_rows), 8), (cap_rows // 8) * 8)
    return max(tile, 8)


# dot_general dimension numbers (single weight orientation, PyTorch (out, in)).
_DN_NT = (((1,), (1,)), ((), ()))   # (m, k) . (n, k) -> (m, n)   == x @ W^T
_DN_NN = (((1,), (0,)), ((), ()))   # (m, k) . (k, n) -> (m, n)   == g @ W


# ----------------------------------------------------------------------------
# Kernel 1: MLP per-atom energies + analytic dE/dD
# ----------------------------------------------------------------------------
def _mlp_energy_grad_kernel(x_ref, w1_ref, b1_ref, w2_ref, b2_ref, w3_ref,
                            b3_ref, e_ref, dedx_ref):
    x = x_ref[...]                      # (tm, nd)
    w1 = w1_ref[...]                    # (h, nd)  -- one orientation only
    b1 = b1_ref[...]                    # (1, h)
    w2 = w2_ref[...]                    # (h, h)
    b2 = b2_ref[...]                    # (1, h)
    w3 = w3_ref[...]                    # (1, h)
    b3 = b3_ref[0, 0]                   # SMEM scalar

    # forward: Linear -> sigmoid -> Linear -> sigmoid -> Linear(1)
    a1 = jax.nn.sigmoid(
        lax.dot_general(x, w1, _DN_NT, preferred_element_type=jnp.float32) + b1)
    a2 = jax.nn.sigmoid(
        lax.dot_general(a1, w2, _DN_NT, preferred_element_type=jnp.float32) + b2)
    # TODO(synk): (tile, 1) column outputs are lane-sparse stores; a lane-dense
    #             (tile/128, 128) relayout would help most on v5e but needs an
    #             in-kernel sublane->lane transpose (lowering risk) — skipped.
    e_ref[...] = jnp.sum(a2 * w3, axis=1, keepdims=True) + b3

    # analytic backward (replaces torch.autograd.grad(per_atom_energies, x))
    g2 = (a2 * (1.0 - a2)) * w3                                        # (tm, h)
    g1 = lax.dot_general(g2, w2, _DN_NN,
                         preferred_element_type=jnp.float32) * (a1 * (1.0 - a1))
    dedx_ref[...] = lax.dot_general(g1, w1, _DN_NN,
                                    preferred_element_type=jnp.float32)


def mlp_energy_and_grad(x, w1, b1, w2, b2, w3, b3, *, max_tile_m=4096):
    """Returns (per_atom_energies (n_atoms,), dEdD (n_atoms, nd)) — no padding."""
    n_atoms, nd = x.shape
    h = w1.shape[0]
    f32 = jnp.float32

    x = x.astype(f32)
    w1 = w1.astype(f32)
    w2 = w2.astype(f32)
    b1r = jnp.reshape(b1.astype(f32), (1, h))
    b2r = jnp.reshape(b2.astype(f32), (1, h))
    w3r = jnp.reshape(w3.astype(f32), (1, h))
    b3r = jnp.reshape(b3.astype(f32), (1, 1))

    # VMEM budgeting (physical lane padding of the minor dim included).
    ndp, hp = _lanes(nd), _lanes(h)
    per_row = 4 * (2 * ndp + 2 * ndp + 4 * hp + 2)       # x, dedx (dbl-buf), a1/a2/g1/g2, e
    w_bytes = 4 * 2 * (hp * ndp + hp * hp + 3 * hp)      # weights/biases, dbl-buf
    budget = max(_TILE_BUDGET - w_bytes, 8 * per_row)
    tile_m = _pick_row_tile(n_atoms, per_row, max_tile_m, budget)
    grid_m = pl.cdiv(n_atoms, tile_m)

    # Loop-invariant (constant block-index) weight specs.
    # TODO(synk): pipeline_mode=pl.Buffered(1) on these would avoid double
    #             buffering loop-invariant blocks; skipped as a lowering risk.
    const = lambda shape: pl.BlockSpec(shape, lambda i: (0, 0))

    e, dedx = pl.pallas_call(
        _mlp_energy_grad_kernel,
        out_shape=(jax.ShapeDtypeStruct((n_atoms, 1), f32),
                   jax.ShapeDtypeStruct((n_atoms, nd), f32)),
        grid=(grid_m,),
        in_specs=[
            pl.BlockSpec((tile_m, nd), lambda i: (i, 0)),      # x (streamed)
            const((h, nd)),                                    # w1
            const((1, h)),                                     # b1
            const((h, h)),                                     # w2
            const((1, h)),                                     # b2
            const((1, h)),                                     # w3
            pl.BlockSpec(memory_space=pltpu.MemorySpace.SMEM), # b3 scalar
        ],
        out_specs=(pl.BlockSpec((tile_m, 1), lambda i: (i, 0)),
                   pl.BlockSpec((tile_m, nd), lambda i: (i, 0))),
        # TODO(synk): on v7x, verify 2-TensorCore sharding; if not, switch this
        #             axis to pltpu.CORE_PARALLEL (no-op elsewhere).
        compiler_params=pltpu.CompilerParams(
            dimension_semantics=("parallel",),
            vmem_limit_bytes=_VMEM_LIMIT),
    )(x, w1, b1r, w2, b2r, w3r, b3r)
    return e[:, 0], dedx


# ----------------------------------------------------------------------------
# Kernel 2: force contraction  contrib[r] = sum_d xd[r,d] * dEdD[unique_i[r],d]
# ----------------------------------------------------------------------------
def _rowdot_gather_kernel(ui_ref, xd_ref, dedx_ref, o_ref):
    idx = ui_ref[...][:, 0]                                    # (tile_r,) int32
    # In-VMEM gather of the needed dE/dD rows (dedx block is loop-invariant).
    rows = jnp.take(dedx_ref[...], idx, axis=0, mode="clip")   # (tile_r, nd)
    o_ref[...] = jnp.sum(xd_ref[...] * rows, axis=1, keepdims=True)


def _rowdot_kernel(a_ref, b_ref, o_ref):
    o_ref[...] = jnp.sum(a_ref[...] * b_ref[...], axis=1, keepdims=True)


def _force_rowdot_fused(xd, unique_i, dedx, tile_r):
    """Fused path: whole dE/dD table resident in VMEM, row gather in-kernel."""
    n_rows, nd = xd.shape
    n_atoms = dedx.shape[0]
    grid_r = pl.cdiv(n_rows, tile_r)
    n_rows_pad = grid_r * tile_r
    # Only the tiny (4 B/row) index column gets padded; xd streams unpadded.
    ui = jnp.pad(unique_i.astype(jnp.int32).reshape(-1, 1),
                 ((0, n_rows_pad - n_rows), (0, 0)))
    out = pl.pallas_call(
        _rowdot_gather_kernel,
        out_shape=jax.ShapeDtypeStruct((n_rows, 1), jnp.float32),
        grid=(grid_r,),
        in_specs=[
            pl.BlockSpec((tile_r, 1), lambda i: (i, 0)),       # unique_i chunk
            pl.BlockSpec((tile_r, nd), lambda i: (i, 0)),      # dD/dR rows (streamed)
            pl.BlockSpec((n_atoms, nd), lambda i: (0, 0)),     # dE/dD table (resident)
        ],
        out_specs=pl.BlockSpec((tile_r, 1), lambda i: (i, 0)),
        compiler_params=pltpu.CompilerParams(
            dimension_semantics=("parallel",),
            vmem_limit_bytes=_VMEM_LIMIT),
    )(ui, xd.astype(jnp.float32), dedx)
    return out[:, 0]


def _force_rowdot_unfused(xd, unique_i, dedx, tile_r):
    """Fallback: XLA gather of dE/dD rows, then a Pallas multiply+row-reduce."""
    n_rows, nd = xd.shape
    grid_r = pl.cdiv(n_rows, tile_r)
    de_rows = dedx[unique_i, :]     # extra HBM pass; only used when fusion is off
    out = pl.pallas_call(
        _rowdot_kernel,
        out_shape=jax.ShapeDtypeStruct((n_rows, 1), jnp.float32),
        grid=(grid_r,),
        in_specs=[pl.BlockSpec((tile_r, nd), lambda i: (i, 0)),
                  pl.BlockSpec((tile_r, nd), lambda i: (i, 0))],
        out_specs=pl.BlockSpec((tile_r, 1), lambda i: (i, 0)),
        compiler_params=pltpu.CompilerParams(
            dimension_semantics=("parallel",),
            vmem_limit_bytes=_VMEM_LIMIT),
    )(xd.astype(jnp.float32), de_rows)
    return out[:, 0]


def _fused_force_budget(n_atoms, nd):
    ndp = _lanes(nd)
    dedx_resident = 2 * 4 * int(n_atoms) * ndp     # full dE/dD table, dbl-buffered
    per_row = 4 * (2 * ndp + 2) + 2 * 4            # xd + out + unique_i, dbl-buffered
    return _TILE_BUDGET - dedx_resident, per_row


@functools.lru_cache(maxsize=None)
def _fused_gather_supported(n_atoms, nd, tile_r):
    """One-time probe (compile + numeric check) of the in-kernel row gather at
    these shapes.  Any failure (lowering or values) -> use the unfused path."""
    try:
        k1, k2 = jax.random.split(jax.random.PRNGKey(7))
        dedx = jax.random.normal(k1, (n_atoms, nd), jnp.float32)
        xd = jax.random.normal(k2, (tile_r, nd), jnp.float32)
        idx = (jnp.arange(tile_r, dtype=jnp.int32) * 13 + 5) % n_atoms
        got = _force_rowdot_fused(xd, idx, dedx, tile_r)
        want = jnp.sum(xd * dedx[idx, :], axis=1)
        return bool(jnp.allclose(got, want, atol=1e-5, rtol=1e-5))
    except Exception:
        return False


def choose_force_path(n_atoms, nd, n_rows, *, max_tile_r=4096):
    """Decide (eagerly, outside jit) whether the fused force kernel is usable."""
    remaining, per_row = _fused_force_budget(n_atoms, nd)
    if remaining < 64 * per_row:
        # TODO(synk): when the dE/dD table does not fit VMEM, a manual DMA
        #             gather of row blocks grouped by atom would be the right
        #             fallback; for now we use the XLA-gather path.
        return False
    tile_r = _pick_row_tile(n_rows, per_row, max_tile_r, remaining)
    return _fused_gather_supported(int(n_atoms), int(nd), int(tile_r))


# ----------------------------------------------------------------------------
# FitTorch.forward equivalent (multi_element_option == 1, energy + force)
# ----------------------------------------------------------------------------
def fit_forward(x, xd, indices, atoms_per_structure, types, xd_indx,
                unique_j, unique_i, params, *,
                max_tile_m=4096, max_tile_r=4096, fuse_gather="auto",
                energy_indices_sorted=False, force_indices_sorted=False):
    # TODO(synk): multi_element_option == 2 (per-element network dispatch over
    #             boolean partitions of atoms) is not implemented.
    # TODO(synk): optional bf16 kernel I/O (keep f32 MXU accumulation) would
    #             roughly halve HBM bytes; needs force-tolerance revalidation.
    del types
    w1, b1, w2, b2, w3, b3 = params
    natoms, nd = x.shape
    n_struct = atoms_per_structure.shape[0]
    n_rows = xd.shape[0]

    # Pallas kernel 1: per-atom energies + analytic dE/dD.
    per_atom_e, dedx = mlp_energy_and_grad(
        x, w1, b1, w2, b2, w3, b3, max_tile_m=max_tile_m)

    # Energy contraction over structures (segment reduction, not scatter-add).
    predicted_energy_total = jax.ops.segment_sum(
        per_atom_e, indices.astype(jnp.int32), num_segments=n_struct,
        indices_are_sorted=energy_indices_sorted)

    # ---- force path ---------------------------------------------------------
    if fuse_gather == "auto":
        use_fused = choose_force_path(natoms, nd, n_rows, max_tile_r=max_tile_r)
    else:
        use_fused = bool(fuse_gather)

    if use_fused:
        remaining, per_row = _fused_force_budget(natoms, nd)
        tile_r = _pick_row_tile(n_rows, per_row, max_tile_r, remaining)
        contrib = _force_rowdot_fused(xd, unique_i, dedx, tile_r)      # kernel 2
    else:
        ndp = _lanes(nd)
        per_row = 4 * (2 * ndp + 2 * ndp + 2)
        tile_r = _pick_row_tile(n_rows, per_row, max_tile_r, _TILE_BUDGET)
        contrib = _force_rowdot_unfused(xd, unique_i, dedx, tile_r)    # kernel 2

    # One flat segment reduction over (atom j, cartesian component).  Output
    # order is [fx0, fy0, fz0, fx1, ...], matching torch.cat + flatten.
    comp = xd_indx[:, 2].astype(jnp.int32)
    seg = unique_j.astype(jnp.int32) * 3 + comp
    predicted_forces = jax.ops.segment_sum(
        contrib, seg, num_segments=3 * natoms,
        indices_are_sorted=force_indices_sorted)
    return predicted_energy_total, predicted_forces


# ----------------------------------------------------------------------------
# Pure-JAX reference (autodiff for dE/dD) for correctness sanity check.
# ----------------------------------------------------------------------------
def _ref_forward(x, xd, indices, atoms_per_structure, xd_indx,
                 unique_j, unique_i, params):
    w1, b1, w2, b2, w3, b3 = params
    natoms = x.shape[0]
    n_struct = atoms_per_structure.shape[0]

    def net(xx):
        a1 = jax.nn.sigmoid(xx @ w1.T + b1)
        a2 = jax.nn.sigmoid(a1 @ w2.T + b2)
        return a2 @ w3.T + b3

    e = net(x)[:, 0]
    energy = jnp.zeros((n_struct,), jnp.float32).at[indices].add(e)
    dEdD = jax.grad(lambda xx: jnp.sum(net(xx)))(x)

    contrib = jnp.sum(xd * dEdD[unique_i, :], axis=1)
    comp = xd_indx[:, 2].astype(jnp.int32)
    forces = jnp.zeros((natoms, 3), jnp.float32).at[unique_j, comp].add(contrib)
    return energy, forces.reshape(-1)


if __name__ == "__main__":
    key = jax.random.PRNGKey(0)
    nd = 32          # descriptor_count
    hidden = 32
    n_atoms = 16
    n_struct = 2
    n_neigh = 4

    ks = jax.random.split(key, 8)
    x = jax.random.normal(ks[0], (n_atoms, nd), jnp.float32)

    # nn.Linear convention: W (out, in), b (out,)
    w1 = 0.2 * jax.random.normal(ks[1], (hidden, nd), jnp.float32)
    b1 = 0.1 * jax.random.normal(ks[2], (hidden,), jnp.float32)
    w2 = 0.2 * jax.random.normal(ks[3], (hidden, hidden), jnp.float32)
    b2 = 0.1 * jax.random.normal(ks[4], (hidden,), jnp.float32)
    w3 = 0.2 * jax.random.normal(ks[5], (1, hidden), jnp.float32)
    b3 = 0.1 * jax.random.normal(ks[6], (1,), jnp.float32)
    params = (w1, b1, w2, b2, w3, b3)

    atoms_per_structure = jnp.array([8, 8], jnp.int32)
    indices = jnp.array([0] * 8 + [1] * 8, jnp.int32)       # atom -> structure
    types = jnp.zeros((n_atoms,), jnp.int32)

    # synthetic derivative bookkeeping: each atom j, n_neigh neighbors i, 3 comps
    rows_j, rows_i, rows_c = [], [], []
    for j in range(n_atoms):
        for k in range(n_neigh):
            i = (j + k) % n_atoms
            for c in range(3):
                rows_j.append(j); rows_i.append(i); rows_c.append(c)
    unique_j = jnp.array(rows_j, jnp.int32)
    unique_i = jnp.array(rows_i, jnp.int32)
    xd_indx = jnp.stack([unique_j, unique_i, jnp.array(rows_c, jnp.int32)], axis=1)
    n_rows = xd_indx.shape[0]                                 # 192
    xd = jax.random.normal(ks[7], (n_rows, nd), jnp.float32)

    # Decide the force-kernel path eagerly (probe compiles once, outside jit).
    fuse = choose_force_path(n_atoms, nd, n_rows)

    fwd = jax.jit(fit_forward,
                  static_argnames=("max_tile_m", "max_tile_r", "fuse_gather",
                                   "energy_indices_sorted",
                                   "force_indices_sorted"))
    energy, forces = fwd(x, xd, indices, atoms_per_structure, types,
                         xd_indx, unique_j, unique_i, params,
                         fuse_gather=fuse, energy_indices_sorted=True)
    jax.block_until_ready((energy, forces))

    ref_e, ref_f = _ref_forward(x, xd, indices, atoms_per_structure,
                                xd_indx, unique_j, unique_i, params)
    assert energy.shape == (n_struct,)
    assert forces.shape == (3 * n_atoms,)
    assert jnp.allclose(energy, ref_e, atol=1e-4, rtol=1e-4)
    assert jnp.allclose(forces, ref_f, atol=1e-4, rtol=1e-4)

    print("KERNEL_OK")
</pallas_src>

<mosaic_0001>
module attributes {stable_mosaic.version = 11 : i64} {
  func.func private @main(%arg0: i32) attributes {dimension_semantics = [#tpu.dimension_semantics<core_parallel>], iteration_bounds = array<i64: 2>, tpu.core_type = #tpu.core_type<sc_scalar_subcore>, window_params = []} {
    return
  }
}

module attributes {stable_mosaic.version = 11 : i64} {
  func.func private @main(%arg0: i32) attributes {dimension_semantics = [#tpu.dimension_semantics<core_parallel>], iteration_bounds = array<i64: 2>, tpu.core_type = #tpu.core_type<sc_scalar_subcore>, window_params = []} {
    return
  }
}

module attributes {stable_mosaic.version = 11 : i64} {
  func.func @_rowdot_kernel(%arg0: i32, %arg1: memref<192x32xf32, #tpu.memory_space<vmem>>, %arg2: memref<192x32xf32, #tpu.memory_space<vmem>>, %arg3: memref<192x1xf32, #tpu.memory_space<vmem>>) attributes {dimension_semantics = [#tpu.dimension_semantics<parallel>], iteration_bounds = array<i64: 1>, scalar_prefetch = 0 : i64, scratch_operands = 0 : i64, tpu.core_type = #tpu.core_type<tc>, window_params = [{transform_indices = @transform_0, window_bounds = array<i64: 192, 32>}, {transform_indices = @transform_1, window_bounds = array<i64: 192, 32>}, {transform_indices = @transform_2, window_bounds = array<i64: 192, 1>}]} {
    %c0 = arith.constant 0 : index
    %c0_0 = arith.constant 0 : index
    %0 = vector.load %arg1[%c0, %c0_0] : memref<192x32xf32, #tpu.memory_space<vmem>>, vector<192x32xf32>
    %c0_1 = arith.constant 0 : index
    %c0_2 = arith.constant 0 : index
    %1 = vector.load %arg2[%c0_1, %c0_2] : memref<192x32xf32, #tpu.memory_space<vmem>>, vector<192x32xf32>
    %2 = arith.mulf %0, %1 : vector<192x32xf32>
    %cst = arith.constant dense<0.000000e+00> : vector<192xf32>
    %3 = vector.multi_reduction <add>, %2, %cst [1] : vector<192x32xf32> to vector<192xf32>
    %4 = vector.shape_cast %3 : vector<192xf32> to vector<192x1xf32>
    %c0_3 = arith.constant 0 : index
    %c0_4 = arith.constant 0 : index
    %5 = vector.load %arg3[%c0_3, %c0_4] : memref<192x1xf32, #tpu.memory_space<vmem>>, vector<192x1xf32>
    tpu.vector_store %arg3[%c0_3, %c0_4], %4 {strides = array<i32>} : memref<192x1xf32, #tpu.memory_space<vmem>>, vector<192x1xf32>,
    return
  }
  func.func @transform_0(%arg0: i32) -> (i32, i32) {
    %c0_i32 = arith.constant 0 : i32
    %c0_i32_0 = arith.constant 0 : i32
    return %arg0, %c0_i32 : i32, i32
  }
  func.func @transform_1(%arg0: i32) -> (i32, i32) {
    %c0_i32 = arith.constant 0 : i32
    %c0_i32_0 = arith.constant 0 : i32
    return %arg0, %c0_i32 : i32, i32
  }
  func.func @transform_2(%arg0: i32) -> (i32, i32) {
    %c0_i32 = arith.constant 0 : i32
    %c0_i32_0 = arith.constant 0 : i32
    return %arg0, %c0_i32 : i32, i32
  }
}

module attributes {stable_mosaic.version = 11 : i64} {
  func.func @_mlp_energy_grad_kernel(%arg0: i32, %arg1: memref<16x32xf32, #tpu.memory_space<vmem>>, %arg2: memref<32x32xf32, #tpu.memory_space<vmem>>, %arg3: memref<1x32xf32, #tpu.memory_space<vmem>>, %arg4: memref<32x32xf32, #tpu.memory_space<vmem>>, %arg5: memref<1x32xf32, #tpu.memory_space<vmem>>, %arg6: memref<1x32xf32, #tpu.memory_space<vmem>>, %arg7: memref<1x1xf32, #tpu.memory_space<smem>>, %arg8: memref<16x1xf32, #tpu.memory_space<vmem>>, %arg9: memref<16x32xf32, #tpu.memory_space<vmem>>) attributes {dimension_semantics = [#tpu.dimension_semantics<parallel>], iteration_bounds = array<i64: 1>, scalar_prefetch = 0 : i64, scratch_operands = 0 : i64, tpu.core_type = #tpu.core_type<tc>, window_params = [{transform_indices = @transform_0, window_bounds = array<i64: 16, 32>}, {pipeline_mode = #tpu.pipeline_mode<synchronous>, transform_indices = @transform_1, window_bounds = array<i64: 32, 32>}, {pipeline_mode = #tpu.pipeline_mode<synchronous>, transform_indices = @transform_2, window_bounds = array<i64: 1, 32>}, {pipeline_mode = #tpu.pipeline_mode<synchronous>, transform_indices = @transform_3, window_bounds = array<i64: 32, 32>}, {pipeline_mode = #tpu.pipeline_mode<synchronous>, transform_indices = @transform_4, window_bounds = array<i64: 1, 32>}, {pipeline_mode = #tpu.pipeline_mode<synchronous>, transform_indices = @transform_5, window_bounds = array<i64: 1, 32>}, {transform_indices = @transform_6, window_bounds = array<i64: 1, 1>}, {transform_indices = @transform_7, window_bounds = array<i64: 16, 1>}, {transform_indices = @transform_8, window_bounds = array<i64: 16, 32>}]} {
    %c0 = arith.constant 0 : index
    %c0_0 = arith.constant 0 : index
    %0 = vector.load %arg1[%c0, %c0_0] : memref<16x32xf32, #tpu.memory_space<vmem>>, vector<16x32xf32>
    %c0_1 = arith.constant 0 : index
    %c0_2 = arith.constant 0 : index
    %1 = vector.load %arg2[%c0_1, %c0_2] : memref<32x32xf32, #tpu.memory_space<vmem>>, vector<32x32xf32>
    %c0_3 = arith.constant 0 : index
    %c0_4 = arith.constant 0 : index
    %2 = vector.load %arg3[%c0_3, %c0_4] : memref<1x32xf32, #tpu.memory_space<vmem>>, vector<1x32xf32>
    %c0_5 = arith.constant 0 : index
    %c0_6 = arith.constant 0 : index
    %3 = vector.load %arg4[%c0_5, %c0_6] : memref<32x32xf32, #tpu.memory_space<vmem>>, vector<32x32xf32>
    %c0_7 = arith.constant 0 : index
    %c0_8 = arith.constant 0 : index
    %4 = vector.load %arg5[%c0_7, %c0_8] : memref<1x32xf32, #tpu.memory_space<vmem>>, vector<1x32xf32>
    %c0_9 = arith.constant 0 : index
    %c0_10 = arith.constant 0 : index
    %5 = vector.load %arg6[%c0_9, %c0_10] : memref<1x32xf32, #tpu.memory_space<vmem>>, vector<1x32xf32>
    %c0_11 = arith.constant 0 : index
    %c0_12 = arith.constant 0 : index
    %6 = memref.load %arg7[%c0_11, %c0_12] : memref<1x1xf32, #tpu.memory_space<smem>>
    %cst = arith.constant dense<0.000000e+00> : vector<16x32xf32>
    %7 = tpu.matmul %0, %1, %cst {dimension_numbers = #tpu.dot_dimension_numbers<[1], [1], [0], [0], [0, 0, 1, 0], [], []>} : vector<16x32xf32>, vector<32x32xf32>, vector<16x32xf32> -> vector<16x32xf32>
    %8 = vector.broadcast %2 : vector<1x32xf32> to vector<16x32xf32>
    %9 = arith.addf %7, %8 : vector<16x32xf32>
    %10 = arith.negf %9 : vector<16x32xf32>
    %11 = math.exp %10 : vector<16x32xf32>
    %cst_13 = arith.constant 1.000000e+00 : f32
    %12 = vector.broadcast %cst_13 : f32 to vector<16x32xf32>
    %13 = arith.addf %12, %11 : vector<16x32xf32>
    %14 = arith.divf %12, %13 : vector<16x32xf32>
    %cst_14 = arith.constant dense<0.000000e+00> : vector<16x32xf32>
    %15 = tpu.matmul %14, %3, %cst_14 {dimension_numbers = #tpu.dot_dimension_numbers<[1], [1], [0], [0], [0, 0, 1, 0], [], []>} : vector<16x32xf32>, vector<32x32xf32>, vector<16x32xf32> -> vector<16x32xf32>
    %16 = vector.broadcast %4 : vector<1x32xf32> to vector<16x32xf32>
    %17 = arith.addf %15, %16 : vector<16x32xf32>
    %18 = arith.negf %17 : vector<16x32xf32>
    %19 = math.exp %18 : vector<16x32xf32>
    %cst_15 = arith.constant 1.000000e+00 : f32
    %20 = vector.broadcast %cst_15 : f32 to vector<16x32xf32>
    %21 = arith.addf %20, %19 : vector<16x32xf32>
    %22 = arith.divf %20, %21 : vector<16x32xf32>
    %23 = vector.broadcast %5 : vector<1x32xf32> to vector<16x32xf32>
    %24 = arith.mulf %22, %23 : vector<16x32xf32>
    %cst_16 = arith.constant dense<0.000000e+00> : vector<16xf32>
    %25 = vector.multi_reduction <add>, %24, %cst_16 [1] : vector<16x32xf32> to vector<16xf32>
    %26 = vector.shape_cast %25 : vector<16xf32> to vector<16x1xf32>
    %27 = vector.broadcast %6 : f32 to vector<16x1xf32>
    %28 = arith.addf %26, %27 : vector<16x1xf32>
    %c0_17 = arith.constant 0 : index
    %c0_18 = arith.constant 0 : index
    %29 = vector.load %arg8[%c0_17, %c0_18] : memref<16x1xf32, #tpu.memory_space<vmem>>, vector<16x1xf32>
    tpu.vector_store %arg8[%c0_17, %c0_18], %28 {strides = array<i32>} : memref<16x1xf32, #tpu.memory_space<vmem>>, vector<16x1xf32>,
    %cst_19 = arith.constant 1.000000e+00 : f32
    %30 = vector.broadcast %cst_19 : f32 to vector<16x32xf32>
    %31 = arith.subf %30, %22 : vector<16x32xf32>
    %32 = arith.mulf %22, %31 : vector<16x32xf32>
    %33 = vector.broadcast %5 : vector<1x32xf32> to vector<16x32xf32>
    %34 = arith.mulf %32, %33 : vector<16x32xf32>
    %cst_20 = arith.constant dense<0.000000e+00> : vector<16x32xf32>
    %35 = tpu.matmul %34, %3, %cst_20 {dimension_numbers = #tpu.dot_dimension_numbers<[1], [0], [0], [1], [0, 0, 1, 1], [], []>} : vector<16x32xf32>, vector<32x32xf32>, vector<16x32xf32> -> vector<16x32xf32>
    %cst_21 = arith.constant 1.000000e+00 : f32
    %36 = vector.broadcast %cst_21 : f32 to vector<16x32xf32>
    %37 = arith.subf %36, %14 : vector<16x32xf32>
    %38 = arith.mulf %14, %37 : vector<16x32xf32>
    %39 = arith.mulf %35, %38 : vector<16x32xf32>
    %cst_22 = arith.constant dense<0.000000e+00> : vector<16x32xf32>
    %40 = tpu.matmul %39, %1, %cst_22 {dimension_numbers = #tpu.dot_dimension_numbers<[1], [0], [0], [1], [0, 0, 1, 1], [], []>} : vector<16x32xf32>, vector<32x32xf32>, vector<16x32xf32> -> vector<16x32xf32>
    %c0_23 = arith.constant 0 : index
    %c0_24 = arith.constant 0 : index
    %41 = vector.load %arg9[%c0_23, %c0_24] : memref<16x32xf32, #tpu.memory_space<vmem>>, vector<16x32xf32>
    tpu.vector_store %arg9[%c0_23, %c0_24], %40 {strides = array<i32>} : memref<16x32xf32, #tpu.memory_space<vmem>>, vector<16x32xf32>,
    return
  }
  func.func @transform_0(%arg0: i32) -> (i32, i32) {
    %c0_i32 = arith.constant 0 : i32
    %c0_i32_0 = arith.constant 0 : i32
    return %arg0, %c0_i32 : i32, i32
  }
  func.func @transform_1(%arg0: i32) -> (i32, i32) {
    %c0_i32 = arith.constant 0 : i32
    %c0_i32_0 = arith.constant 0 : i32
    %c0_i32_1 = arith.constant 0 : i32
    return %c0_i32, %c0_i32_0 : i32, i32
  }
  func.func @transform_2(%arg0: i32) -> (i32, i32) {
    %c0_i32 = arith.constant 0 : i32
    %c0_i32_0 = arith.constant 0 : i32
    %c0_i32_1 = arith.constant 0 : i32
    return %c0_i32, %c0_i32_0 : i32, i32
  }
  func.func @transform_3(%arg0: i32) -> (i32, i32) {
    %c0_i32 = arith.constant 0 : i32
    %c0_i32_0 = arith.constant 0 : i32
    %c0_i32_1 = arith.constant 0 : i32
    return %c0_i32, %c0_i32_0 : i32, i32
  }
  func.func @transform_4(%arg0: i32) -> (i32, i32) {
    %c0_i32 = arith.constant 0 : i32
    %c0_i32_0 = arith.constant 0 : i32
    %c0_i32_1 = arith.constant 0 : i32
    return %c0_i32, %c0_i32_0 : i32, i32
  }
  func.func @transform_5(%arg0: i32) -> (i32, i32) {
    %c0_i32 = arith.constant 0 : i32
    %c0_i32_0 = arith.constant 0 : i32
    %c0_i32_1 = arith.constant 0 : i32
    return %c0_i32, %c0_i32_0 : i32, i32
  }
  func.func @transform_6(%arg0: i32) -> (i32, i32) {
    %c0_i32 = arith.constant 0 : i32
    %c0_i32_0 = arith.constant 0 : i32
    %c0_i32_1 = arith.constant 0 : i32
    return %c0_i32, %c0_i32_0 : i32, i32
  }
  func.func @transform_7(%arg0: i32) -> (i32, i32) {
    %c0_i32 = arith.constant 0 : i32
    %c0_i32_0 = arith.constant 0 : i32
    return %arg0, %c0_i32 : i32, i32
  }
  func.func @transform_8(%arg0: i32) -> (i32, i32) {
    %c0_i32 = arith.constant 0 : i32
    %c0_i32_0 = arith.constant 0 : i32
    return %arg0, %c0_i32 : i32, i32
  }
}

</mosaic_0001>

<llo_original>
// kernel: fit_forward.3
$region0: #{fit_forward.3}
  #allocation0 [shape = 'u32[]', space=smem, size = 0x4, offset = 0x4, fixed_abs, tag = 'smem constant byte address 0x4 - core index']
  #allocation1 [shape = 'u32[144,128]{1,0:T(1,128)}', space=vmem, size = 0x12000, scoped, tag = 'internal scratch']
  %s0 = inlined_call_operand.vmem [shape: f32[192,32], index: 0, kind: input, shape index: {}]
  %s1 = inlined_call_operand.vmem [shape: f32[192,32], index: 1, kind: input, shape index: {}]
  %s2 = inlined_call_operand.vmem [shape: f32[192,1], index: 2, kind: output, shape index: {}]
  %s3 = sld [smem:[#allocation0]]
  $region18: #{fit_forward.3} parent=0
    _
  %s5 = ssub.s32 1, %s3
  %s6 = scalar_select 0, %s5, %s3
  // Predicated region
  $region2: #{fit_forward.3} parent=0 // pred_check
    _
  $region3: #{fit_forward.3} parent=0 // pred_check_branch
    %8 = sbr.rel (0) target = $region5
  $region4: #{fit_forward.3} parent=0 // pred_region
    _
  $region5: #{fit_forward.3} parent=0 // pred_fallthru
    _
  // Predicated region
  $region6: #{fit_forward.3} parent=0 // pred_check
    _
  $region7: #{fit_forward.3} parent=0 // pred_check_branch
    %10 = sbr.rel (0) target = $region9
  $region8: #{fit_forward.3} parent=0 // pred_region
    _
  $region9: #{fit_forward.3} parent=0 // pred_fallthru
    _
  %v11 = vld [vmem:[%s0] sm:$0xff]
  %v12 = vld [vmem:[%s0 + $0x8] sm:$0xff]
  %v13 = vld [vmem:[%s0 + $0x10] sm:$0xff]
  %v14 = vld [vmem:[%s0 + $0x18] sm:$0xff]
  %v15 = vld [vmem:[%s0 + $0x20] sm:$0xff]
  %v16 = vld [vmem:[%s0 + $0x28] sm:$0xff]
  %v17 = vld [vmem:[%s0 + $0x30] sm:$0xff]
  %v18 = vld [vmem:[%s0 + $0x38] sm:$0xff]
  %v19 = vld [vmem:[%s0 + $0x40] sm:$0xff]
  %v20 = vld [vmem:[%s0 + $0x48] sm:$0xff]
  %v21 = vld [vmem:[%s0 + $0x50] sm:$0xff]
  %v22 = vld [vmem:[%s0 + $0x58] sm:$0xff]
  %v23 = vld [vmem:[%s0 + $0x60] sm:$0xff]
  %v24 = vld [vmem:[%s0 + $0x68] sm:$0xff]
  %v25 = vld [vmem:[%s0 + $0x70] sm:$0xff]
  %v26 = vld [vmem:[%s0 + $0x78] sm:$0xff]
  %v27 = vld [vmem:[%s0 + $0x80] sm:$0xff]
  %v28 = vld [vmem:[%s0 + $0x88] sm:$0xff]
  %v29 = vld [vmem:[%s0 + $0x90] sm:$0xff]
  %v30 = vld [vmem:[%s0 + $0x98] sm:$0xff]
  %v31 = vld [vmem:[%s0 + $0xa0] sm:$0xff]
  %v32 = vld [vmem:[%s0 + $0xa8] sm:$0xff]
  %v33 = vld [vmem:[%s0 + $0xb0] sm:$0xff]
  %v34 = vld [vmem:[%s0 + $0xb8] sm:$0xff]
  %v35 = vld [vmem:[%s1] sm:$0xff]
  %v36 = vld [vmem:[%s1 + $0x8] sm:$0xff]
  %v37 = vld [vmem:[%s1 + $0x10] sm:$0xff]
  %v38 = vld [vmem:[%s1 + $0x18] sm:$0xff]
  %v39 = vld [vmem:[%s1 + $0x20] sm:$0xff]
  %v40 = vld [vmem:[%s1 + $0x28] sm:$0xff]
  %v41 = vld [vmem:[%s1 + $0x30] sm:$0xff]
  %v42 = vld [vmem:[%s1 + $0x38] sm:$0xff]
  %v43 = vld [vmem:[%s1 + $0x40] sm:$0xff]
  %v44 = vld [vmem:[%s1 + $0x48] sm:$0xff]
  %v45 = vld [vmem:[%s1 + $0x50] sm:$0xff]
  %v46 = vld [vmem:[%s1 + $0x58] sm:$0xff]
  %v47 = vld [vmem:[%s1 + $0x60] sm:$0xff]
  %v48 = vld [vmem:[%s1 + $0x68] sm:$0xff]
  %v49 = vld [vmem:[%s1 + $0x70] sm:$0xff]
  %v50 = vld [vmem:[%s1 + $0x78] sm:$0xff]
  %v51 = vld [vmem:[%s1 + $0x80] sm:$0xff]
  %v52 = vld [vmem:[%s1 + $0x88] sm:$0xff]
  %v53 = vld [vmem:[%s1 + $0x90] sm:$0xff]
  %v54 = vld [vmem:[%s1 + $0x98] sm:$0xff]
  %v55 = vld [vmem:[%s1 + $0xa0] sm:$0xff]
  %v56 = vld [vmem:[%s1 + $0xa8] sm:$0xff]
  %v57 = vld [vmem:[%s1 + $0xb0] sm:$0xff]
  %v58 = vld [vmem:[%s1 + $0xb8] sm:$0xff]
  %v59 = vmul.f32 %v11, %v35
  %v60 = vmul.f32 %v12, %v36
  %v61 = vmul.f32 %v13, %v37
  %v62 = vmul.f32 %v14, %v38
  %v63 = vmul.f32 %v15, %v39
  %v64 = vmul.f32 %v16, %v40
  %v65 = vmul.f32 %v17, %v41
  %v66 = vmul.f32 %v18, %v42
  %v67 = vmul.f32 %v19, %v43
  %v68 = vmul.f32 %v20, %v44
  %v69 = vmul.f32 %v21, %v45
  %v70 = vmul.f32 %v22, %v46
  %v71 = vmul.f32 %v23, %v47
  %v72 = vmul.f32 %v24, %v48
  %v73 = vmul.f32 %v25, %v49
  %v74 = vmul.f32 %v26, %v50
  %v75 = vmul.f32 %v27, %v51
  %v76 = vmul.f32 %v28, %v52
  %v77 = vmul.f32 %v29, %v53
  %v78 = vmul.f32 %v30, %v54
  %v79 = vmul.f32 %v31, %v55
  %v80 = vmul.f32 %v32, %v56
  %v81 = vmul.f32 %v33, %v57
  %v82 = vmul.f32 %v34, %v58
  %vm83 = vcmask 261120
  %v84 = vsel %vm83, %v59, 0.0
  %85 = vadd.xlane.f32.xlu0 %v84
  %v86 = vpop.xlane.xlu0 %85
  %v87 = vsel %vm83, %v60, 0.0
  %88 = vadd.xlane.f32.xlu0 %v87
  %v89 = vpop.xlane.xlu0 %88
  %v90 = vsel %vm83, %v61, 0.0
  %91 = vadd.xlane.f32.xlu0 %v90
  %v92 = vpop.xlane.xlu0 %91
  %v93 = vsel %vm83, %v62, 0.0
  %94 = vadd.xlane.f32.xlu0 %v93
  %v95 = vpop.xlane.xlu0 %94
  %v96 = vsel %vm83, %v63, 0.0
  %97 = vadd.xlane.f32.xlu0 %v96
  %v98 = vpop.xlane.xlu0 %97
  %v99 = vsel %vm83, %v64, 0.0
  %100 = vadd.xlane.f32.xlu0 %v99
  %v101 = vpop.xlane.xlu0 %100
  %v102 = vsel %vm83, %v65, 0.0
  %103 = vadd.xlane.f32.xlu0 %v102
  %v104 = vpop.xlane.xlu0 %103
  %v105 = vsel %vm83, %v66, 0.0
  %106 = vadd.xlane.f32.xlu0 %v105
  %v107 = vpop.xlane.xlu0 %106
  %v108 = vsel %vm83, %v67, 0.0
  %109 = vadd.xlane.f32.xlu0 %v108
  %v110 = vpop.xlane.xlu0 %109
  %v111 = vsel %vm83, %v68, 0.0
  %112 = vadd.xlane.f32.xlu0 %v111
  %v113 = vpop.xlane.xlu0 %112
  %v114 = vsel %vm83, %v69, 0.0
  %115 = vadd.xlane.f32.xlu0 %v114
  %v116 = vpop.xlane.xlu0 %115
  %v117 = vsel %vm83, %v70, 0.0
  %118 = vadd.xlane.f32.xlu0 %v117
  %v119 = vpop.xlane.xlu0 %118
  %v120 = vsel %vm83, %v71, 0.0
  %121 = vadd.xlane.f32.xlu0 %v120
  %v122 = vpop.xlane.xlu0 %121
  %v123 = vsel %vm83, %v72, 0.0
  %124 = vadd.xlane.f32.xlu0 %v123
  %v125 = vpop.xlane.xlu0 %124
  %v126 = vsel %vm83, %v73, 0.0
  %127 = vadd.xlane.f32.xlu0 %v126
  %v128 = vpop.xlane.xlu0 %127
  %v129 = vsel %vm83, %v74, 0.0
  %130 = vadd.xlane.f32.xlu0 %v129
  %v131 = vpop.xlane.xlu0 %130
  %v132 = vsel %vm83, %v75, 0.0
  %133 = vadd.xlane.f32.xlu0 %v132
  %v134 = vpop.xlane.xlu0 %133
  %v135 = vsel %vm83, %v76, 0.0
  %136 = vadd.xlane.f32.xlu0 %v135
  %v137 = vpop.xlane.xlu0 %136
  %v138 = vsel %vm83, %v77, 0.0
  %139 = vadd.xlane.f32.xlu0 %v138
  %v140 = vpop.xlane.xlu0 %139
  %v141 = vsel %vm83, %v78, 0.0
  %142 = vadd.xlane.f32.xlu0 %v141
  %v143 = vpop.xlane.xlu0 %142
  %v144 = vsel %vm83, %v79, 0.0
  %145 = vadd.xlane.f32.xlu0 %v144
  %v146 = vpop.xlane.xlu0 %145
  %v147 = vsel %vm83, %v80, 0.0
  %148 = vadd.xlane.f32.xlu0 %v147
  %v149 = vpop.xlane.xlu0 %148
  %v150 = vsel %vm83, %v81, 0.0
  %151 = vadd.xlane.f32.xlu0 %v150
  %v152 = vpop.xlane.xlu0 %151
  %v153 = vsel %vm83, %v82, 0.0
  %154 = vadd.xlane.f32.xlu0 %v153
  %v155 = vpop.xlane.xlu0 %154
  %vm156 = vcmask 7168
  %157 = vst.msk [vmem:[%s2] sm:$0xff] %vm156, %v86
  %158 = vst.msk [vmem:[%s2 + $0x8] sm:$0xff] %vm156, %v89
  %159 = vst.msk [vmem:[%s2 + $0x10] sm:$0xff] %vm156, %v92
  %160 = vst.msk [vmem:[%s2 + $0x18] sm:$0xff] %vm156, %v95
  %161 = vst.msk [vmem:[%s2 + $0x20] sm:$0xff] %vm156, %v98
  %162 = vst.msk [vmem:[%s2 + $0x28] sm:$0xff] %vm156, %v101
  %163 = vst.msk [vmem:[%s2 + $0x30] sm:$0xff] %vm156, %v104
  %164 = vst.msk [vmem:[%s2 + $0x38] sm:$0xff] %vm156, %v107
  %165 = vst.msk [vmem:[%s2 + $0x40] sm:$0xff] %vm156, %v110
  %166 = vst.msk [vmem:[%s2 + $0x48] sm:$0xff] %vm156, %v113
  %167 = vst.msk [vmem:[%s2 + $0x50] sm:$0xff] %vm156, %v116
  %168 = vst.msk [vmem:[%s2 + $0x58] sm:$0xff] %vm156, %v119
  %169 = vst.msk [vmem:[%s2 + $0x60] sm:$0xff] %vm156, %v122
  %170 = vst.msk [vmem:[%s2 + $0x68] sm:$0xff] %vm156, %v125
  %171 = vst.msk [vmem:[%s2 + $0x70] sm:$0xff] %vm156, %v128
  %172 = vst.msk [vmem:[%s2 + $0x78] sm:$0xff] %vm156, %v131
  %173 = vst.msk [vmem:[%s2 + $0x80] sm:$0xff] %vm156, %v134
  %174 = vst.msk [vmem:[%s2 + $0x88] sm:$0xff] %vm156, %v137
  %175 = vst.msk [vmem:[%s2 + $0x90] sm:$0xff] %vm156, %v140
  %176 = vst.msk [vmem:[%s2 + $0x98] sm:$0xff] %vm156, %v143
  %177 = vst.msk [vmem:[%s2 + $0xa0] sm:$0xff] %vm156, %v146
  %178 = vst.msk [vmem:[%s2 + $0xa8] sm:$0xff] %vm156, %v149
  %179 = vst.msk [vmem:[%s2 + $0xb0] sm:$0xff] %vm156, %v152
  %180 = vst.msk [vmem:[%s2 + $0xb8] sm:$0xff] %vm156, %v155
  // Predicated region
  $region10: #{fit_forward.3} parent=0 // pred_check
    _
  $region11: #{fit_forward.3} parent=0 // pred_check_branch
    %182 = sbr.rel (0) target = $region13
  $region12: #{fit_forward.3} parent=0 // pred_region
    _
  $region13: #{fit_forward.3} parent=0 // pred_fallthru
    _
  // Predicated region
  $region14: #{fit_forward.3} parent=0 // pred_check
    _
  $region15: #{fit_forward.3} parent=0 // pred_check_branch
    %184 = sbr.rel (0) target = $region17
  $region16: #{fit_forward.3} parent=0 // pred_region
    _
  $region17: #{fit_forward.3} parent=0 // pred_fallthru
    _

// kernel: fit_forward.2
$region0: #{fit_forward.2}
  #allocation0 [shape = 'u32[]', space=smem, size = 0x4, offset = 0x4, fixed_abs, tag = 'smem constant byte address 0x4 - core index']
  #allocation1 [shape = 'u32[144,128]{1,0:T(1,128)}', space=vmem, size = 0x12000, scoped, tag = 'internal scratch']
  #allocation2 [shape = 'f32[1,1]{1,0:T(1,128)S(6)}', space=smem, size = 0x200, scoped, tag = 'scoped memory for fit_forward.2']
  %s0 = inlined_call_operand.vmem [shape: f32[16,32], index: 0, kind: input, shape index: {}]
  %s1 = inlined_call_operand.vmem [shape: f32[32,32], index: 1, kind: input, shape index: {}]
  %s2 = inlined_call_operand.vmem [shape: f32[1,32], index: 2, kind: input, shape index: {}]
  %s3 = inlined_call_operand.vmem [shape: f32[32,32], index: 3, kind: input, shape index: {}]
  %s4 = inlined_call_operand.vmem [shape: f32[1,32], index: 4, kind: input, shape index: {}]
  %s5 = inlined_call_operand.vmem [shape: f32[1,32], index: 5, kind: input, shape index: {}]
  %s6 = inlined_call_operand.<no memory space> [shape: f32[1,1], index: 6, kind: input, shape index: {}]
  %s7 = inlined_call_operand.vmem [shape: f32[16,1], index: 7, kind: output, shape index: {0}]
  %s8 = inlined_call_operand.vmem [shape: f32[16,32], index: 8, kind: output, shape index: {1}]
  %9 = xla_tuple %s7, %s8
  %s10 = sld [smem:[#allocation0]]
  $region46: #{fit_forward.2} parent=0
    _
  %s12 = ssub.s32 1, %s10
  %s13 = scalar_select 0, %s12, %s10
  %14 = sst [smem:[#allocation2]] %s6
  // Predicated region
  $region2: #{fit_forward.2} parent=0 // pred_check
    _
  $region3: #{fit_forward.2} parent=0 // pred_check_branch
    %16 = sbr.rel (0) target = $region5
  $region4: #{fit_forward.2} parent=0 // pred_region
    _
  $region5: #{fit_forward.2} parent=0 // pred_fallthru
    _
  // Predicated region
  $region6: #{fit_forward.2} parent=0 // pred_check
    _
  $region7: #{fit_forward.2} parent=0 // pred_check_branch
    %18 = sbr.rel (0) target = $region9
  $region8: #{fit_forward.2} parent=0 // pred_region
    _
  $region9: #{fit_forward.2} parent=0 // pred_fallthru
    _
  // Predicated region
  $region10: #{fit_forward.2} parent=0 // pred_check
    _
  $region11: #{fit_forward.2} parent=0 // pred_check_branch
    %20 = sbr.rel (0) target = $region13
  $region12: #{fit_forward.2} parent=0 // pred_region
    _
  $region13: #{fit_forward.2} parent=0 // pred_fallthru
    _
  // Predicated region
  $region14: #{fit_forward.2} parent=0 // pred_check
    _
  $region15: #{fit_forward.2} parent=0 // pred_check_branch
    %22 = sbr.rel (0) target = $region17
  $region16: #{fit_forward.2} parent=0 // pred_region
    _
  $region17: #{fit_forward.2} parent=0 // pred_fallthru
    _
  // Predicated region
  $region18: #{fit_forward.2} parent=0 // pred_check
    _
  $region19: #{fit_forward.2} parent=0 // pred_check_branch
    %24 = sbr.rel (0) target = $region21
  $region20: #{fit_forward.2} parent=0 // pred_region
    _
  $region21: #{fit_forward.2} parent=0 // pred_fallthru
    _
  // Predicated region
  $region22: #{fit_forward.2} parent=0 // pred_check
    _
  $region23: #{fit_forward.2} parent=0 // pred_check_branch
    %26 = sbr.rel (0) target = $region25
  $region24: #{fit_forward.2} parent=0 // pred_region
    _
  $region25: #{fit_forward.2} parent=0 // pred_fallthru
    _
  // Predicated region
  $region26: #{fit_forward.2} parent=0 // pred_check
    _
  $region27: #{fit_forward.2} parent=0 // pred_check_branch
    %28 = sbr.rel (0) target = $region29
  $region28: #{fit_forward.2} parent=0 // pred_region
    _
  $region29: #{fit_forward.2} parent=0 // pred_fallthru
    _
  %v29 = vld [vmem:[%s0] sm:$0xff]
  %v30 = vld [vmem:[%s0 + $0x8] sm:$0xff]
  %v31 = vld [vmem:[%s1] sm:$0xff]
  %v32 = vld [vmem:[%s1 + $0x8] sm:$0xff]
  %v33 = vld [vmem:[%s1 + $0x10] sm:$0xff]
  %v34 = vld [vmem:[%s1 + $0x18] sm:$0xff]
  %v35 = vld [vmem:[%s2] sm:$0x1]
  %v36 = vld [vmem:[%s3] sm:$0xff]
  %v37 = vld [vmem:[%s3 + $0x8] sm:$0xff]
  %v38 = vld [vmem:[%s3 + $0x10] sm:$0xff]
  %v39 = vld [vmem:[%s3 + $0x18] sm:$0xff]
  %v40 = vld [vmem:[%s4] sm:$0x1]
  %v41 = vld [vmem:[%s5] sm:$0x1]
  %s42 = sld [smem:[#allocation2]]
  %v44 = vlaneseq
  %v45 = vshrl.u32 %v44, 7
  %v46 = vsub.s32 0, %v45
  %v47 = vrot.slane %v35, %v46
  %vm49 = vcmask 261120
  %v51 = vsel %vm49, %v29, 0
  %v54 = vsel %vm49, %v30, 0
  %v57 = vsel %vm49, %v31, 0
  %v60 = vsel %vm49, %v32, 0
  %v63 = vsel %vm49, %v33, 0
  %v66 = vsel %vm49, %v34, 0
  %68 = vmatprep.subr.mxu0 0.0
  %69 = vmatpush1.xpose.msra.mxu0 %v57
  %70 = vmatprep.subr.mxu0 0.0
  %71 = vmatpush1.xpose.msra.mxu0 %v60
  %72 = vmatprep.subr.mxu0 0.0
  %73 = vmatpush1.xpose.msra.mxu0 %v63
  %74 = vmatprep.subr.mxu0 0.0
  %75 = vmatpush1.xpose.msra.mxu0 %v66
  %76 = vmatprep.subr.mxu0 0.0
  %77 = vmatpush1.xpose.msra.mxu0 0.0
  %78 = vmatprep.subr.mxu0 0.0
  %79 = vmatpush1.xpose.msra.mxu0 0.0
  %80 = vmatprep.subr.mxu0 0.0
  %81 = vmatpush1.xpose.msra.mxu0 0.0
  %82 = vmatprep.subr.mxu0 0.0
  %83 = vmatpush1.xpose.msra.mxu0 0.0
  %84 = vmatprep.subr.mxu0 0.0
  %85 = vmatpush1.xpose.msra.mxu0 0.0
  %86 = vmatprep.subr.mxu0 0.0
  %87 = vmatpush1.xpose.msra.mxu0 0.0
  %88 = vmatprep.subr.mxu0 0.0
  %89 = vmatpush1.xpose.msra.mxu0 0.0
  %90 = vmatprep.subr.mxu0 0.0
  %91 = vmatpush1.xpose.msra.mxu0 0.0
  %92 = vmatprep.subr.mxu0 0.0
  %93 = vmatpush1.xpose.msra.mxu0 0.0
  %94 = vmatprep.subr.mxu0 0.0
  %95 = vmatpush1.xpose.msra.mxu0 0.0
  %96 = vmatprep.subr.mxu0 0.0
  %97 = vmatpush1.xpose.msra.mxu0 0.0
  %98 = vmatprep.subr.mxu0 0.0
  %99 = vmatpush1.xpose.msra.mxu0 0.0
  %100 = vmatprep.subr.mxu0 0.0
  %101 = vmatpush1.xpose.msra.mxu0 0.0
  %102 = vmatprep.subr.mxu0 0.0
  %103 = vmatpush1.xpose.msra.mxu0 0.0
  %104 = vmatprep.subr.mxu0 0.0
  %105 = vmatpush1.xpose.msra.mxu0 0.0
  %106 = vmatprep.subr.mxu0 0.0
  %107 = vmatpush1.xpose.msra.mxu0 0.0
  %108 = vmatprep.subr.mxu0 0.0
  %109 = vmatpush1.xpose.msra.mxu0 0.0
  %110 = vmatprep.subr.mxu0 0.0
  %111 = vmatpush1.xpose.msra.mxu0 0.0
  %112 = vmatprep.subr.mxu0 0.0
  %113 = vmatpush1.xpose.msra.mxu0 0.0
  %114 = vmatprep.subr.mxu0 0.0
  %115 = vmatpush1.xpose.msra.mxu0 0.0
  %116 = vmatprep.subr.mxu0 0.0
  %117 = vmatpush1.xpose.msra.mxu0 0.0
  %118 = vmatprep.subr.mxu0 0.0
  %119 = vmatpush1.xpose.msra.mxu0 0.0
  %120 = vmatprep.subr.mxu0 0.0
  %121 = vmatpush1.xpose.msra.mxu0 0.0
  %122 = vmatprep.subr.mxu0 0.0
  %123 = vmatpush1.xpose.msra.mxu0 0.0
  %124 = vmatprep.subr.mxu0 0.0
  %125 = vmatpush1.xpose.msra.mxu0 0.0
  %126 = vmatprep.subr.mxu0 0.0
  %127 = vmatpush1.xpose.msra.mxu0 0.0
  %128 = vmatprep.subr.mxu0 0.0
  %129 = vmatpush1.xpose.msra.mxu0 0.0
  %130 = vmatprep.subr.mxu0 0.0
  %131 = vmatpush1.xpose.msra.mxu0 0.0
  %132 = vmatprep.mubr.f32.mxu0 0.0
  %133 = vmatmul.mubr.f32.gmra.mrb[0].mxu0 %v51
  %v134 = vpop.f32.mrb[0].mxu0
  %v135 = vadd.f32 %v47, %v134
  %v136 = vpop.f32.mrb[0].mxu0
  %137 = vmatprep.mubr.f32.mxu0 0.0
  %138 = vmatmul.mubr.f32.gmra.mrb[0].mxu0 %v54
  %v139 = vpop.f32.mrb[0].mxu0
  %v140 = vadd.f32 %v47, %v139
  %v141 = vpop.f32.mrb[0].mxu0
  %142 = vdwg.mxu0
  %v143 = vxor.u32 %v135, 2147483648
  %v144 = vxor.u32 %v140, 2147483648
  %v145 = vmul.f32 %v143, 1.442695
  %v146 = vpow.pop %v145
  %v147 = vmul.f32 %v144, 1.442695
  %v148 = vpow.pop %v147
  %v149 = vadd.f32 %v146, 1.0
  %v150 = vadd.f32 %v148, 1.0
  %v151 = vrcp.pop %v149
  %v152 = vmul.f32 1.0, %v151
  %v153 = vrcp.pop %v150
  %v154 = vmul.f32 1.0, %v153
  %v156 = vlaneseq
  %v157 = vshrl.u32 %v156, 7
  %v158 = vsub.s32 0, %v157
  %v159 = vrot.slane %v40, %v158
  %v162 = vsel %vm49, %v152, 0
  %v165 = vsel %vm49, %v154, 0
  %v168 = vsel %vm49, %v36, 0
  %v171 = vsel %vm49, %v37, 0
  %v174 = vsel %vm49, %v38, 0
  %v177 = vsel %vm49, %v39, 0
  %179 = vmatprep.subr.mxu0 0.0
  %180 = vmatpush1.xpose.msra.mxu0 %v168
  %181 = vmatprep.subr.mxu0 0.0
  %182 = vmatpush1.xpose.msra.mxu0 %v171
  %183 = vmatprep.subr.mxu0 0.0
  %184 = vmatpush1.xpose.msra.mxu0 %v174
  %185 = vmatprep.subr.mxu0 0.0
  %186 = vmatpush1.xpose.msra.mxu0 %v177
  %187 = vmatprep.subr.mxu0 0.0
  %188 = vmatpush1.xpose.msra.mxu0 0.0
  %189 = vmatprep.subr.mxu0 0.0
  %190 = vmatpush1.xpose.msra.mxu0 0.0
  %191 = vmatprep.subr.mxu0 0.0
  %192 = vmatpush1.xpose.msra.mxu0 0.0
  %193 = vmatprep.subr.mxu0 0.0
  %194 = vmatpush1.xpose.msra.mxu0 0.0
  %195 = vmatprep.subr.mxu0 0.0
  %196 = vmatpush1.xpose.msra.mxu0 0.0
  %197 = vmatprep.subr.mxu0 0.0
  %198 = vmatpush1.xpose.msra.mxu0 0.0
  %199 = vmatprep.subr.mxu0 0.0
  %200 = vmatpush1.xpose.msra.mxu0 0.0
  %201 = vmatprep.subr.mxu0 0.0
  %202 = vmatpush1.xpose.msra.mxu0 0.0
  %203 = vmatprep.subr.mxu0 0.0
  %204 = vmatpush1.xpose.msra.mxu0 0.0
  %205 = vmatprep.subr.mxu0 0.0
  %206 = vmatpush1.xpose.msra.mxu0 0.0
  %207 = vmatprep.subr.mxu0 0.0
  %208 = vmatpush1.xpose.msra.mxu0 0.0
  %209 = vmatprep.subr.mxu0 0.0
  %210 = vmatpush1.xpose.msra.mxu0 0.0
  %211 = vmatprep.subr.mxu0 0.0
  %212 = vmatpush1.xpose.msra.mxu0 0.0
  %213 = vmatprep.subr.mxu0 0.0
  %214 = vmatpush1.xpose.msra.mxu0 0.0
  %215 = vmatprep.subr.mxu0 0.0
  %216 = vmatpush1.xpose.msra.mxu0 0.0
  %217 = vmatprep.subr.mxu0 0.0
  %218 = vmatpush1.xpose.msra.mxu0 0.0
  %219 = vmatprep.subr.mxu0 0.0
  %220 = vmatpush1.xpose.msra.mxu0 0.0
  %221 = vmatprep.subr.mxu0 0.0
  %222 = vmatpush1.xpose.msra.mxu0 0.0
  %223 = vmatprep.subr.mxu0 0.0
  %224 = vmatpush1.xpose.msra.mxu0 0.0
  %225 = vmatprep.subr.mxu0 0.0
  %226 = vmatpush1.xpose.msra.mxu0 0.0
  %227 = vmatprep.subr.mxu0 0.0
  %228 = vmatpush1.xpose.msra.mxu0 0.0
  %229 = vmatprep.subr.mxu0 0.0
  %230 = vmatpush1.xpose.msra.mxu0 0.0
  %231 = vmatprep.subr.mxu0 0.0
  %232 = vmatpush1.xpose.msra.mxu0 0.0
  %233 = vmatprep.subr.mxu0 0.0
  %234 = vmatpush1.xpose.msra.mxu0 0.0
  %235 = vmatprep.subr.mxu0 0.0
  %236 = vmatpush1.xpose.msra.mxu0 0.0
  %237 = vmatprep.subr.mxu0 0.0
  %238 = vmatpush1.xpose.msra.mxu0 0.0
  %239 = vmatprep.subr.mxu0 0.0
  %240 = vmatpush1.xpose.msra.mxu0 0.0
  %241 = vmatprep.subr.mxu0 0.0
  %242 = vmatpush1.xpose.msra.mxu0 0.0
  %243 = vmatprep.mubr.f32.mxu0 0.0
  %244 = vmatmul.mubr.f32.gmra.mrb[0].mxu0 %v162
  %v245 = vpop.f32.mrb[0].mxu0
  %v246 = vadd.f32 %v159, %v245
  %v247 = vpop.f32.mrb[0].mxu0
  %248 = vmatprep.mubr.f32.mxu0 0.0
  %249 = vmatmul.mubr.f32.gmra.mrb[0].mxu0 %v165
  %v250 = vpop.f32.mrb[0].mxu0
  %v251 = vadd.f32 %v159, %v250
  %v252 = vpop.f32.mrb[0].mxu0
  %253 = vdwg.mxu0
  %v254 = vxor.u32 %v246, 2147483648
  %v255 = vxor.u32 %v251, 2147483648
  %v256 = vmul.f32 %v254, 1.442695
  %v257 = vpow.pop %v256
  %v258 = vmul.f32 %v255, 1.442695
  %v259 = vpow.pop %v258
  %v260 = vadd.f32 %v257, 1.0
  %v261 = vadd.f32 %v259, 1.0
  %v262 = vrcp.pop %v260
  %v263 = vmul.f32 1.0, %v262
  %v264 = vrcp.pop %v261
  %v265 = vmul.f32 1.0, %v264
  %v267 = vlaneseq
  %v268 = vshrl.u32 %v267, 7
  %v269 = vsub.s32 0, %v268
  %v270 = vrot.slane %v41, %v269
  %v272 = vmul.f32 %v263, %v270
  %v273 = vmul.f32 %v265, %v270
  %v274 = vsel %vm49, %v272, 0.0
  %275 = vadd.xlane.f32.xlu0 %v274
  %v276 = vpop.xlane.xlu0 %275
  %v277 = vsel %vm49, %v273, 0.0
  %278 = vadd.xlane.f32.xlu0 %v277
  %v279 = vpop.xlane.xlu0 %278
  %v280 = vstv %s42
  %v281 = vadd.f32 %v276, %v280
  %v282 = vadd.f32 %v279, %v280
  %vm283 = vcmask 7168
  %284 = vst.msk [vmem:[%s7] sm:$0xff] %vm283, %v281
  %285 = vst.msk [vmem:[%s7 + $0x8] sm:$0xff] %vm283, %v282
  %v286 = vsub.f32 1.0, %v263
  %v287 = vsub.f32 1.0, %v265
  %v288 = vmul.f32 %v263, %v286
  %v289 = vmul.f32 %v265, %v287
  %v290 = vmul.f32 %v288, %v270
  %v291 = vmul.f32 %v289, %v270
  %v293 = vsel %vm49, %v290, 0
  %v296 = vsel %vm49, %v291, 0
  %298 = vmatprep.subr.mxu0 0.0
  %299 = vmatpush1.msra.mxu0 %v36
  %300 = vmatprep.subr.mxu0 0.0
  %301 = vmatpush1.msra.mxu0 %v37
  %302 = vmatprep.subr.mxu0 0.0
  %303 = vmatpush1.msra.mxu0 %v38
  %304 = vmatprep.subr.mxu0 0.0
  %305 = vmatpush1.msra.mxu0 %v39
  %306 = vmatprep.subr.mxu0 0.0
  %307 = vmatpush1.msra.mxu0 0.0
  %308 = vmatprep.subr.mxu0 0.0
  %309 = vmatpush1.msra.mxu0 0.0
  %310 = vmatprep.subr.mxu0 0.0
  %311 = vmatpush1.msra.mxu0 0.0
  %312 = vmatprep.subr.mxu0 0.0
  %313 = vmatpush1.msra.mxu0 0.0
  %314 = vmatprep.subr.mxu0 0.0
  %315 = vmatpush1.msra.mxu0 0.0
  %316 = vmatprep.subr.mxu0 0.0
  %317 = vmatpush1.msra.mxu0 0.0
  %318 = vmatprep.subr.mxu0 0.0
  %319 = vmatpush1.msra.mxu0 0.0
  %320 = vmatprep.subr.mxu0 0.0
  %321 = vmatpush1.msra.mxu0 0.0
  %322 = vmatprep.subr.mxu0 0.0
  %323 = vmatpush1.msra.mxu0 0.0
  %324 = vmatprep.subr.mxu0 0.0
  %325 = vmatpush1.msra.mxu0 0.0
  %326 = vmatprep.subr.mxu0 0.0
  %327 = vmatpush1.msra.mxu0 0.0
  %328 = vmatprep.subr.mxu0 0.0
  %329 = vmatpush1.msra.mxu0 0.0
  %330 = vmatprep.subr.mxu0 0.0
  %331 = vmatpush1.msra.mxu0 0.0
  %332 = vmatprep.subr.mxu0 0.0
  %333 = vmatpush1.msra.mxu0 0.0
  %334 = vmatprep.subr.mxu0 0.0
  %335 = vmatpush1.msra.mxu0 0.0
  %336 = vmatprep.subr.mxu0 0.0
  %337 = vmatpush1.msra.mxu0 0.0
  %338 = vmatprep.subr.mxu0 0.0
  %339 = vmatpush1.msra.mxu0 0.0
  %340 = vmatprep.subr.mxu0 0.0
  %341 = vmatpush1.msra.mxu0 0.0
  %342 = vmatprep.subr.mxu0 0.0
  %343 = vmatpush1.msra.mxu0 0.0
  %344 = vmatprep.subr.mxu0 0.0
  %345 = vmatpush1.msra.mxu0 0.0
  %346 = vmatprep.subr.mxu0 0.0
  %347 = vmatpush1.msra.mxu0 0.0
  %348 = vmatprep.subr.mxu0 0.0
  %349 = vmatpush1.msra.mxu0 0.0
  %350 = vmatprep.subr.mxu0 0.0
  %351 = vmatpush1.msra.mxu0 0.0
  %352 = vmatprep.subr.mxu0 0.0
  %353 = vmatpush1.msra.mxu0 0.0
  %354 = vmatprep.subr.mxu0 0.0
  %355 = vmatpush1.msra.mxu0 0.0
  %356 = vmatprep.subr.mxu0 0.0
  %357 = vmatpush1.msra.mxu0 0.0
  %358 = vmatprep.subr.mxu0 0.0
  %359 = vmatpush1.msra.mxu0 0.0
  %360 = vmatprep.subr.mxu0 0.0
  %361 = vmatpush1.msra.mxu0 0.0
  %362 = vmatprep.mubr.f32.mxu0 0.0
  %363 = vmatmul.mubr.f32.gmra.mrb[0].mxu0 %v293
  %v364 = vpop.f32.mrb[0].mxu0
  %v365 = vadd.f32 0.0, %v364
  %v366 = vpop.f32.mrb[0].mxu0
  %367 = vmatprep.mubr.f32.mxu0 0.0
  %368 = vmatmul.mubr.f32.gmra.mrb[0].mxu0 %v296
  %v369 = vpop.f32.mrb[0].mxu0
  %v370 = vadd.f32 0.0, %v369
  %v371 = vpop.f32.mrb[0].mxu0
  %372 = vdwg.mxu0
  %v373 = vsub.f32 1.0, %v152
  %v374 = vsub.f32 1.0, %v154
  %v375 = vmul.f32 %v152, %v373
  %v376 = vmul.f32 %v154, %v374
  %v377 = vmul.f32 %v365, %v375
  %v378 = vmul.f32 %v370, %v376
  %v380 = vsel %vm49, %v377, 0
  %v383 = vsel %vm49, %v378, 0
  %385 = vmatprep.subr.mxu0 0.0
  %386 = vmatpush1.msra.mxu0 %v31
  %387 = vmatprep.subr.mxu0 0.0
  %388 = vmatpush1.msra.mxu0 %v32
  %389 = vmatprep.subr.mxu0 0.0
  %390 = vmatpush1.msra.mxu0 %v33
  %391 = vmatprep.subr.mxu0 0.0
  %392 = vmatpush1.msra.mxu0 %v34
  %393 = vmatprep.subr.mxu0 0.0
  %394 = vmatpush1.msra.mxu0 0.0
  %395 = vmatprep.subr.mxu0 0.0
  %396 = vmatpush1.msra.mxu0 0.0
  %397 = vmatprep.subr.mxu0 0.0
  %398 = vmatpush1.msra.mxu0 0.0
  %399 = vmatprep.subr.mxu0 0.0
  %400 = vmatpush1.msra.mxu0 0.0
  %401 = vmatprep.subr.mxu0 0.0
  %402 = vmatpush1.msra.mxu0 0.0
  %403 = vmatprep.subr.mxu0 0.0
  %404 = vmatpush1.msra.mxu0 0.0
  %405 = vmatprep.subr.mxu0 0.0
  %406 = vmatpush1.msra.mxu0 0.0
  %407 = vmatprep.subr.mxu0 0.0
  %408 = vmatpush1.msra.mxu0 0.0
  %409 = vmatprep.subr.mxu0 0.0
  %410 = vmatpush1.msra.mxu0 0.0
  %411 = vmatprep.subr.mxu0 0.0
  %412 = vmatpush1.msra.mxu0 0.0
  %413 = vmatprep.subr.mxu0 0.0
  %414 = vmatpush1.msra.mxu0 0.0
  %415 = vmatprep.subr.mxu0 0.0
  %416 = vmatpush1.msra.mxu0 0.0
  %417 = vmatprep.subr.mxu0 0.0
  %418 = vmatpush1.msra.mxu0 0.0
  %419 = vmatprep.subr.mxu0 0.0
  %420 = vmatpush1.msra.mxu0 0.0
  %421 = vmatprep.subr.mxu0 0.0
  %422 = vmatpush1.msra.mxu0 0.0
  %423 = vmatprep.subr.mxu0 0.0
  %424 = vmatpush1.msra.mxu0 0.0
  %425 = vmatprep.subr.mxu0 0.0
  %426 = vmatpush1.msra.mxu0 0.0
  %427 = vmatprep.subr.mxu0 0.0
  %428 = vmatpush1.msra.mxu0 0.0
  %429 = vmatprep.subr.mxu0 0.0
  %430 = vmatpush1.msra.mxu0 0.0
  %431 = vmatprep.subr.mxu0 0.0
  %432 = vmatpush1.msra.mxu0 0.0
  %433 = vmatprep.subr.mxu0 0.0
  %434 = vmatpush1.msra.mxu0 0.0
  %435 = vmatprep.subr.mxu0 0.0
  %436 = vmatpush1.msra.mxu0 0.0
  %437 = vmatprep.subr.mxu0 0.0
  %438 = vmatpush1.msra.mxu0 0.0
  %439 = vmatprep.subr.mxu0 0.0
  %440 = vmatpush1.msra.mxu0 0.0
  %441 = vmatprep.subr.mxu0 0.0
  %442 = vmatpush1.msra.mxu0 0.0
  %443 = vmatprep.subr.mxu0 0.0
  %444 = vmatpush1.msra.mxu0 0.0
  %445 = vmatprep.subr.mxu0 0.0
  %446 = vmatpush1.msra.mxu0 0.0
  %447 = vmatprep.subr.mxu0 0.0
  %448 = vmatpush1.msra.mxu0 0.0
  %449 = vmatprep.mubr.f32.mxu0 0.0
  %450 = vmatmul.mubr.f32.gmra.mrb[0].mxu0 %v380
  %v451 = vpop.f32.mrb[0].mxu0
  %v452 = vadd.f32 0.0, %v451
  %v453 = vpop.f32.mrb[0].mxu0
  %454 = vmatprep.mubr.f32.mxu0 0.0
  %455 = vmatmul.mubr.f32.gmra.mrb[0].mxu0 %v383
  %v456 = vpop.f32.mrb[0].mxu0
  %v457 = vadd.f32 0.0, %v456
  %v458 = vpop.f32.mrb[0].mxu0
  %459 = vdwg.mxu0
  %460 = vst.msk [vmem:[%s8] sm:$0xff] %vm49, %v452
  %461 = vst.msk [vmem:[%s8 + $0x8] sm:$0xff] %vm49, %v457
  // Predicated region
  $region30: #{fit_forward.2} parent=0 // pred_check
    _
  $region31: #{fit_forward.2} parent=0 // pred_check_branch
    %463 = sbr.rel (0) target = $region33
  $region32: #{fit_forward.2} parent=0 // pred_region
    _
  $region33: #{fit_forward.2} parent=0 // pred_fallthru
    _
  // Predicated region
  $region34: #{fit_forward.2} parent=0 // pred_check
    _
  $region35: #{fit_forward.2} parent=0 // pred_check_branch
    %465 = sbr.rel (0) target = $region37
  $region36: #{fit_forward.2} parent=0 // pred_region
    _
  $region37: #{fit_forward.2} parent=0 // pred_fallthru
    _
  // Predicated region
  $region38: #{fit_forward.2} parent=0 // pred_check
    _
  $region39: #{fit_forward.2} parent=0 // pred_check_branch
    %467 = sbr.rel (0) target = $region41
  $region40: #{fit_forward.2} parent=0 // pred_region
    _
  $region41: #{fit_forward.2} parent=0 // pred_fallthru
    _
  // Predicated region
  $region42: #{fit_forward.2} parent=0 // pred_check
    _
  $region43: #{fit_forward.2} parent=0 // pred_check_branch
    %469 = sbr.rel (0) target = $region45
  $region44: #{fit_forward.2} parent=0 // pred_region
    _
  $region45: #{fit_forward.2} parent=0 // pred_fallthru
    _

</llo_original>
